<compile_context>
chip_gen: v7x
topology: tpu7x:2x2x1
jax: 0.10.0
libtpu: 0.0.40
codegen_flags: <defaults>
</compile_context>

<pallas_src>
import math

import jax
import jax.numpy as jnp
from jax.experimental import pallas as pl
from jax.experimental.pallas import tpu as pltpu


def _round_up(x, m):
    return ((x + m - 1) // m) * m


def soft_q_kernel(s_ref, a_ref, w1s_ref, w1a_ref, b1_ref, w2_ref, b2_ref,
                  w3_ref, b3_ref, o_ref):
    # ----- linear1 over cat(state, action), computed as a split matmul (MXU).
    h1 = jnp.dot(s_ref[...], w1s_ref[...], preferred_element_type=jnp.float32)
    h1 = h1 + jnp.dot(a_ref[...], w1a_ref[...],
                      preferred_element_type=jnp.float32)
    h1 = jnp.maximum(h1 + b1_ref[...], 0.0)

    # ----- linear2 + relu (MXU).
    h2 = jnp.dot(h1, w2_ref[...], preferred_element_type=jnp.float32)
    h2 = jnp.maximum(h2 + b2_ref[...], 0.0)

    # ----- linear3 (hidden -> 1): VPU multiply + lane reduce, no MXU pass.
    # w3_ref is the (1, hidden) row of the final weight; b3 is a scalar in SMEM.
    q = jnp.sum(h2 * w3_ref[...], axis=-1) + b3_ref[0, 0]        # (TB,)

    # Lane-dense store: one (1, TB) row per grid step.
    o_ref[...] = q[None, :].astype(o_ref.dtype)


def soft_q_forward(state, action, params, *, block_b=512):
    """state: (B, num_inputs) f32, action: (B, num_actions) f32.

    params: dict with
      w1: (num_inputs + num_actions, hidden)   (stored transposed vs PyTorch)
      b1: (1, hidden)
      w2: (hidden, hidden)
      b2: (1, hidden)
      w3: (hidden, 1)
      b3: (1, 1)
    Returns (B, 1) f32.
    """
    B, ds = state.shape
    da = action.shape[1]

    # Batch tile: big (512) blocks for pipelining / roofline when B is large,
    # otherwise the whole (sublane-rounded) batch in one block.
    tb = block_b if B >= block_b else _round_up(max(B, 1), 8)
    padded_b = _round_up(B, tb)
    if padded_b != B:
        state = jnp.pad(state, ((0, padded_b - B), (0, 0)))
        action = jnp.pad(action, ((0, padded_b - B), (0, 0)))
    num_blocks = padded_b // tb

    w1, b1, w2, b2, w3, b3 = (params["w1"], params["b1"], params["w2"],
                              params["b2"], params["w3"], params["b3"])
    # Split W1 so cat(state, action) never has to be materialized.
    w1s = w1[:ds, :]
    w1a = w1[ds:, :]
    w3_row = w3.reshape(1, -1)

    def resident(shape):
        # Whole array in VMEM, same block every grid step (no re-DMA).
        return pl.BlockSpec(shape, lambda i: (0, 0))

    out = pl.pallas_call(
        soft_q_kernel,
        out_shape=jax.ShapeDtypeStruct((1, padded_b), jnp.float32),
        grid=(num_blocks,),
        in_specs=[
            pl.BlockSpec((tb, ds), lambda i: (i, 0)),      # state block
            pl.BlockSpec((tb, da), lambda i: (i, 0)),      # action block
            resident(w1s.shape),
            resident(w1a.shape),
            resident(b1.shape),
            resident(w2.shape),
            resident(b2.shape),
            resident(w3_row.shape),
            pl.BlockSpec(memory_space=pltpu.MemorySpace.SMEM),   # b3 scalar
        ],
        out_specs=pl.BlockSpec((1, tb), lambda i: (0, i)),  # lane-dense output
        compiler_params=pltpu.CompilerParams(
            dimension_semantics=("parallel",),
            vmem_limit_bytes=32 * 1024 * 1024,
        ),
    )(state, action, w1s, w1a, b1, w2, b2, w3_row, b3)

    return out[0, :B, None]


def init_soft_q_params(key, num_inputs, num_actions, hidden_size, init_w=0.003):
    """Mirrors the PyTorch module's init.

    linear1/linear2: default nn.Linear init U(-1/sqrt(fan_in), 1/sqrt(fan_in)).
    linear3 weight/bias: U(-init_w, init_w).
    Weights stored transposed: (in_features, out_features).
    """
    in_dim = num_inputs + num_actions
    k1, k2, k3, k4, k5, k6 = jax.random.split(key, 6)
    bound1 = 1.0 / math.sqrt(in_dim)
    bound2 = 1.0 / math.sqrt(hidden_size)
    return {
        "w1": jax.random.uniform(k1, (in_dim, hidden_size), jnp.float32,
                                 -bound1, bound1),
        "b1": jax.random.uniform(k2, (1, hidden_size), jnp.float32,
                                 -bound1, bound1),
        "w2": jax.random.uniform(k3, (hidden_size, hidden_size), jnp.float32,
                                 -bound2, bound2),
        "b2": jax.random.uniform(k4, (1, hidden_size), jnp.float32,
                                 -bound2, bound2),
        "w3": jax.random.uniform(k5, (hidden_size, 1), jnp.float32,
                                 -init_w, init_w),
        "b3": jax.random.uniform(k6, (1, 1), jnp.float32, -init_w, init_w),
    }


def _reference_forward(state, action, p):
    x = jnp.concatenate([state, action], axis=1)
    h1 = jnp.maximum(x @ p["w1"] + p["b1"], 0.0)
    h2 = jnp.maximum(h1 @ p["w2"] + p["b2"], 0.0)
    return h2 @ p["w3"] + p["b3"]


if __name__ == "__main__":
    key = jax.random.PRNGKey(0)
    k_state, k_action, k_params = jax.random.split(key, 3)

    batch = 8
    num_inputs = 16
    num_actions = 4
    hidden_size = 32

    state = jax.random.normal(k_state, (batch, num_inputs), jnp.float32)
    action = jax.random.normal(k_action, (batch, num_actions), jnp.float32)
    params = init_soft_q_params(k_params, num_inputs, num_actions, hidden_size)

    out = soft_q_forward(state, action, params)
    out = jax.block_until_ready(out)

    ref = _reference_forward(state, action, params)
    assert out.shape == (batch, 1), out.shape
    assert jnp.allclose(out, ref, atol=1e-5, rtol=1e-5), "mismatch vs reference"

    print("KERNEL_OK")
</pallas_src>

<mosaic_0001>
module attributes {stable_mosaic.version = 11 : i64} {
  func.func @soft_q_kernel(%arg0: i32, %arg1: memref<8x16xf32, #tpu.memory_space<vmem>>, %arg2: memref<8x4xf32, #tpu.memory_space<vmem>>, %arg3: memref<16x32xf32, #tpu.memory_space<vmem>>, %arg4: memref<4x32xf32, #tpu.memory_space<vmem>>, %arg5: memref<1x32xf32, #tpu.memory_space<vmem>>, %arg6: memref<32x32xf32, #tpu.memory_space<vmem>>, %arg7: memref<1x32xf32, #tpu.memory_space<vmem>>, %arg8: memref<1x32xf32, #tpu.memory_space<vmem>>, %arg9: memref<1x1xf32, #tpu.memory_space<smem>>, %arg10: memref<1x8xf32, #tpu.memory_space<vmem>>) attributes {dimension_semantics = [#tpu.dimension_semantics<parallel>], iteration_bounds = array<i64: 1>, scalar_prefetch = 0 : i64, scratch_operands = 0 : i64, tpu.core_type = #tpu.core_type<tc>, window_params = [{transform_indices = @transform_0, window_bounds = array<i64: 8, 16>}, {transform_indices = @transform_1, window_bounds = array<i64: 8, 4>}, {pipeline_mode = #tpu.pipeline_mode<synchronous>, transform_indices = @transform_2, window_bounds = array<i64: 16, 32>}, {pipeline_mode = #tpu.pipeline_mode<synchronous>, transform_indices = @transform_3, window_bounds = array<i64: 4, 32>}, {pipeline_mode = #tpu.pipeline_mode<synchronous>, transform_indices = @transform_4, window_bounds = array<i64: 1, 32>}, {pipeline_mode = #tpu.pipeline_mode<synchronous>, transform_indices = @transform_5, window_bounds = array<i64: 32, 32>}, {pipeline_mode = #tpu.pipeline_mode<synchronous>, transform_indices = @transform_6, window_bounds = array<i64: 1, 32>}, {pipeline_mode = #tpu.pipeline_mode<synchronous>, transform_indices = @transform_7, window_bounds = array<i64: 1, 32>}, {transform_indices = @transform_8, window_bounds = array<i64: 1, 1>}, {transform_indices = @transform_9, window_bounds = array<i64: 1, 8>}]} {
    %c0 = arith.constant 0 : index
    %c0_0 = arith.constant 0 : index
    %0 = vector.load %arg1[%c0, %c0_0] : memref<8x16xf32, #tpu.memory_space<vmem>>, vector<8x16xf32>
    %c0_1 = arith.constant 0 : index
    %c0_2 = arith.constant 0 : index
    %1 = vector.load %arg3[%c0_1, %c0_2] : memref<16x32xf32, #tpu.memory_space<vmem>>, vector<16x32xf32>
    %cst = arith.constant dense<0.000000e+00> : vector<8x32xf32>
    %2 = tpu.matmul %0, %1, %cst {dimension_numbers = #tpu.dot_dimension_numbers<[1], [0], [0], [1], [0, 0, 1, 1], [], []>} : vector<8x16xf32>, vector<16x32xf32>, vector<8x32xf32> -> vector<8x32xf32>
    %c0_3 = arith.constant 0 : index
    %c0_4 = arith.constant 0 : index
    %3 = vector.load %arg2[%c0_3, %c0_4] : memref<8x4xf32, #tpu.memory_space<vmem>>, vector<8x4xf32>
    %c0_5 = arith.constant 0 : index
    %c0_6 = arith.constant 0 : index
    %4 = vector.load %arg4[%c0_5, %c0_6] : memref<4x32xf32, #tpu.memory_space<vmem>>, vector<4x32xf32>
    %cst_7 = arith.constant dense<0.000000e+00> : vector<8x32xf32>
    %5 = tpu.matmul %3, %4, %cst_7 {dimension_numbers = #tpu.dot_dimension_numbers<[1], [0], [0], [1], [0, 0, 1, 1], [], []>} : vector<8x4xf32>, vector<4x32xf32>, vector<8x32xf32> -> vector<8x32xf32>
    %6 = arith.addf %2, %5 : vector<8x32xf32>
    %c0_8 = arith.constant 0 : index
    %c0_9 = arith.constant 0 : index
    %7 = vector.load %arg5[%c0_8, %c0_9] : memref<1x32xf32, #tpu.memory_space<vmem>>, vector<1x32xf32>
    %8 = vector.broadcast %7 : vector<1x32xf32> to vector<8x32xf32>
    %9 = arith.addf %6, %8 : vector<8x32xf32>
    %cst_10 = arith.constant 0.000000e+00 : f32
    %10 = vector.broadcast %cst_10 : f32 to vector<8x32xf32>
    %11 = arith.maximumf %9, %10 : vector<8x32xf32>
    %c0_11 = arith.constant 0 : index
    %c0_12 = arith.constant 0 : index
    %12 = vector.load %arg6[%c0_11, %c0_12] : memref<32x32xf32, #tpu.memory_space<vmem>>, vector<32x32xf32>
    %cst_13 = arith.constant dense<0.000000e+00> : vector<8x32xf32>
    %13 = tpu.matmul %11, %12, %cst_13 {dimension_numbers = #tpu.dot_dimension_numbers<[1], [0], [0], [1], [0, 0, 1, 1], [], []>} : vector<8x32xf32>, vector<32x32xf32>, vector<8x32xf32> -> vector<8x32xf32>
    %c0_14 = arith.constant 0 : index
    %c0_15 = arith.constant 0 : index
    %14 = vector.load %arg7[%c0_14, %c0_15] : memref<1x32xf32, #tpu.memory_space<vmem>>, vector<1x32xf32>
    %15 = vector.broadcast %14 : vector<1x32xf32> to vector<8x32xf32>
    %16 = arith.addf %13, %15 : vector<8x32xf32>
    %cst_16 = arith.constant 0.000000e+00 : f32
    %17 = vector.broadcast %cst_16 : f32 to vector<8x32xf32>
    %18 = arith.maximumf %16, %17 : vector<8x32xf32>
    %c0_17 = arith.constant 0 : index
    %c0_18 = arith.constant 0 : index
    %19 = vector.load %arg8[%c0_17, %c0_18] : memref<1x32xf32, #tpu.memory_space<vmem>>, vector<1x32xf32>
    %20 = vector.broadcast %19 : vector<1x32xf32> to vector<8x32xf32>
    %21 = arith.mulf %18, %20 : vector<8x32xf32>
    %cst_19 = arith.constant dense<0.000000e+00> : vector<8xf32>
    %22 = vector.multi_reduction <add>, %21, %cst_19 [1] : vector<8x32xf32> to vector<8xf32>
    %c0_20 = arith.constant 0 : index
    %c0_21 = arith.constant 0 : index
    %23 = memref.load %arg9[%c0_20, %c0_21] : memref<1x1xf32, #tpu.memory_space<smem>>
    %24 = vector.broadcast %23 : f32 to vector<8xf32>
    %25 = arith.addf %22, %24 : vector<8xf32>
    %26 = vector.shape_cast %25 : vector<8xf32> to vector<1x8xf32>
    %c0_22 = arith.constant 0 : index
    %c0_23 = arith.constant 0 : index
    %27 = vector.load %arg10[%c0_22, %c0_23] : memref<1x8xf32, #tpu.memory_space<vmem>>, vector<1x8xf32>
    tpu.vector_store %arg10[%c0_22, %c0_23], %26 {strides = array<i32>} : memref<1x8xf32, #tpu.memory_space<vmem>>, vector<1x8xf32>,
    return
  }
  func.func @transform_0(%arg0: i32) -> (i32, i32) {
    %c0_i32 = arith.constant 0 : i32
    %c0_i32_0 = arith.constant 0 : i32
    return %arg0, %c0_i32 : i32, i32
  }
  func.func @transform_1(%arg0: i32) -> (i32, i32) {
    %c0_i32 = arith.constant 0 : i32
    %c0_i32_0 = arith.constant 0 : i32
    return %arg0, %c0_i32 : i32, i32
  }
  func.func @transform_2(%arg0: i32) -> (i32, i32) {
    %c0_i32 = arith.constant 0 : i32
    %c0_i32_0 = arith.constant 0 : i32
    %c0_i32_1 = arith.constant 0 : i32
    return %c0_i32, %c0_i32_0 : i32, i32
  }
  func.func @transform_3(%arg0: i32) -> (i32, i32) {
    %c0_i32 = arith.constant 0 : i32
    %c0_i32_0 = arith.constant 0 : i32
    %c0_i32_1 = arith.constant 0 : i32
    return %c0_i32, %c0_i32_0 : i32, i32
  }
  func.func @transform_4(%arg0: i32) -> (i32, i32) {
    %c0_i32 = arith.constant 0 : i32
    %c0_i32_0 = arith.constant 0 : i32
    %c0_i32_1 = arith.constant 0 : i32
    return %c0_i32, %c0_i32_0 : i32, i32
  }
  func.func @transform_5(%arg0: i32) -> (i32, i32) {
    %c0_i32 = arith.constant 0 : i32
    %c0_i32_0 = arith.constant 0 : i32
    %c0_i32_1 = arith.constant 0 : i32
    return %c0_i32, %c0_i32_0 : i32, i32
  }
  func.func @transform_6(%arg0: i32) -> (i32, i32) {
    %c0_i32 = arith.constant 0 : i32
    %c0_i32_0 = arith.constant 0 : i32
    %c0_i32_1 = arith.constant 0 : i32
    return %c0_i32, %c0_i32_0 : i32, i32
  }
  func.func @transform_7(%arg0: i32) -> (i32, i32) {
    %c0_i32 = arith.constant 0 : i32
    %c0_i32_0 = arith.constant 0 : i32
    %c0_i32_1 = arith.constant 0 : i32
    return %c0_i32, %c0_i32_0 : i32, i32
  }
  func.func @transform_8(%arg0: i32) -> (i32, i32) {
    %c0_i32 = arith.constant 0 : i32
    %c0_i32_0 = arith.constant 0 : i32
    %c0_i32_1 = arith.constant 0 : i32
    return %c0_i32, %c0_i32_0 : i32, i32
  }
  func.func @transform_9(%arg0: i32) -> (i32, i32) {
    %c0_i32 = arith.constant 0 : i32
    %c0_i32_0 = arith.constant 0 : i32
    return %c0_i32, %arg0 : i32, i32
  }
}

</mosaic_0001>

<llo_original>
// kernel: tpu_custom_call.1
$region0: #{tpu_custom_call.1}
  #allocation0 [shape = 'u32[]', space=smem, size = 0x4, offset = 0x4, fixed_abs, tag = 'smem constant byte address 0x4 - core index']
  #allocation1 [shape = 'u32[144,128]{1,0:T(1,128)}', space=vmem, size = 0x12000, scoped, tag = 'internal scratch']
  #allocation2 [shape = 'f32[1,1]{1,0:T(1,128)S(6)}', space=smem, size = 0x200, scoped, tag = 'scoped memory for tpu_custom_call.1']
  %s0 = inlined_call_operand.hbm [shape: f32[8,16], index: 0, kind: input, shape index: {}]
  %s1 = inlined_call_operand.vmem [shape: f32[8,4], index: 1, kind: input, shape index: {}]
  %s2 = inlined_call_operand.hbm [shape: f32[16,32], index: 2, kind: input, shape index: {}]
  %s3 = inlined_call_operand.hbm [shape: f32[4,32], index: 3, kind: input, shape index: {}]
  %s4 = inlined_call_operand.vmem [shape: f32[1,32], index: 4, kind: input, shape index: {}]
  %s5 = inlined_call_operand.vmem [shape: f32[32,32], index: 5, kind: input, shape index: {}]
  %s6 = inlined_call_operand.vmem [shape: f32[1,32], index: 6, kind: input, shape index: {}]
  %s7 = inlined_call_operand.vmem [shape: f32[1,32], index: 7, kind: input, shape index: {}]
  %s8 = inlined_call_operand.<no memory space> [shape: f32[1,1], index: 8, kind: input, shape index: {}]
  %s9 = inlined_call_operand.hbm [shape: f32[1,8], index: 9, kind: output, shape index: {}]
  %s10 = sld [smem:[#allocation0]]
  $region58: #{tpu_custom_call.1} parent=0
    _
  %s12 = ssub.s32 1, %s10
  %s13 = scalar_select 0, %s12, %s10
  %14 = sst [smem:[#allocation2]] %s8
  $region1: #{tpu_custom_call.1} parent=0
    #allocation3 [shape = 'u8[4096]{0}', space=vmem, size = 0x1000, scoped, tag = 'input window, operand 0, single buffered']
    #allocation4 [shape = 's32[1]{0}', space=sflag, size = 0x4, scoped, tag = 'scoped memory for tpu_custom_call.1']
    #allocation5 [shape = 's32[1]{0}', space=sflag, size = 0x4, scoped, tag = 'scoped memory for tpu_custom_call.1']
    #allocation6 [shape = 'u8[8192]{0}', space=vmem, size = 0x2000, scoped, tag = 'input window, operand 2, single buffered']
    #allocation7 [shape = 's32[1]{0}', space=sflag, size = 0x4, scoped, tag = 'scoped memory for tpu_custom_call.1']
    #allocation8 [shape = 'u8[2048]{0}', space=vmem, size = 0x800, scoped, tag = 'input window, operand 3, single buffered']
    #allocation9 [shape = 'u8[512]{0}', space=vmem, size = 0x400, scoped, tag = 'output window, operand 0, single buffered']
    %15 = vsyncpa [#allocation4], 0
    %16 = vsyncpa [#allocation7], 0
    %17 = vsyncpa [#allocation5], 0
    // Predicated region
    $region2: #{tpu_custom_call.1} parent=1 // pred_check
      _
    $region3: #{tpu_custom_call.1} parent=1 // pred_check_branch
      %19 = sbr.rel (0) target = $region5
    $region4: #{tpu_custom_call.1} parent=1 // pred_region
      %s21 = ssub.s32 128, 128
      %22 = vsyncadd [#allocation4], %s21
      %s24 = sshll.u32 [#allocation3], 4
      %s25 = int_to_ptr.vmem [resolvable:$true] %s24
      %27 = dma.hbm_to_vmem [thread:$0]  %s0, 128, %s25, [#allocation4]
    $region5: #{tpu_custom_call.1} parent=1 // pred_fallthru
      _
    // Predicated region
    $region6: #{tpu_custom_call.1} parent=1 // pred_check
      _
    $region7: #{tpu_custom_call.1} parent=1 // pred_check_branch
      %29 = sbr.rel (0) target = $region9
    $region8: #{tpu_custom_call.1} parent=1 // pred_region
      _
    $region9: #{tpu_custom_call.1} parent=1 // pred_fallthru
      _
    // Predicated region
    $region10: #{tpu_custom_call.1} parent=1 // pred_check
      _
    $region11: #{tpu_custom_call.1} parent=1 // pred_check_branch
      %31 = sbr.rel (0) target = $region13
    $region12: #{tpu_custom_call.1} parent=1 // pred_region
      %s33 = ssub.s32 256, 256
      %34 = vsyncadd [#allocation7], %s33
      %s35 = sshll.u32 [#allocation6], 4
      %s36 = int_to_ptr.vmem [resolvable:$true] %s35
      %41 = dma.hbm_to_vmem [thread:$0]  %s2, 256, %s36, [#allocation7], 128, 128, 8
    $region13: #{tpu_custom_call.1} parent=1 // pred_fallthru
      _
    // Predicated region
    $region14: #{tpu_custom_call.1} parent=1 // pred_check
      _
    $region15: #{tpu_custom_call.1} parent=1 // pred_check_branch
      %43 = sbr.rel (0) target = $region17
    $region16: #{tpu_custom_call.1} parent=1 // pred_region
      %s45 = ssub.s32 64, 64
      %46 = vsyncadd [#allocation7], %s45
      %s48 = sshll.u32 [#allocation8], 4
      %s49 = int_to_ptr.vmem [resolvable:$true] %s48
      %51 = dma.hbm_to_vmem [thread:$0]  %s3, 64, %s49, [#allocation7]
    $region17: #{tpu_custom_call.1} parent=1 // pred_fallthru
      _
    // Predicated region
    $region18: #{tpu_custom_call.1} parent=1 // pred_check
      _
    $region19: #{tpu_custom_call.1} parent=1 // pred_check_branch
      %53 = sbr.rel (0) target = $region21
    $region20: #{tpu_custom_call.1} parent=1 // pred_region
      _
    $region21: #{tpu_custom_call.1} parent=1 // pred_fallthru
      _
    // Predicated region
    $region22: #{tpu_custom_call.1} parent=1 // pred_check
      _
    $region23: #{tpu_custom_call.1} parent=1 // pred_check_branch
      %55 = sbr.rel (0) target = $region25
    $region24: #{tpu_custom_call.1} parent=1 // pred_region
      _
    $region25: #{tpu_custom_call.1} parent=1 // pred_fallthru
      _
    // Predicated region
    $region26: #{tpu_custom_call.1} parent=1 // pred_check
      _
    $region27: #{tpu_custom_call.1} parent=1 // pred_check_branch
      %57 = sbr.rel (0) target = $region29
    $region28: #{tpu_custom_call.1} parent=1 // pred_region
      _
    $region29: #{tpu_custom_call.1} parent=1 // pred_fallthru
      _
    // Predicated region
    $region30: #{tpu_custom_call.1} parent=1 // pred_check
      _
    $region31: #{tpu_custom_call.1} parent=1 // pred_check_branch
      %59 = sbr.rel (0) target = $region33
    $region32: #{tpu_custom_call.1} parent=1 // pred_region
      _
    $region33: #{tpu_custom_call.1} parent=1 // pred_fallthru
      _
    // Predicated region
    $region34: #{tpu_custom_call.1} parent=1 // pred_check
      _
    $region35: #{tpu_custom_call.1} parent=1 // pred_check_branch
      %61 = sbr.rel (0) target = $region37
    $region36: #{tpu_custom_call.1} parent=1 // pred_region
      _
    $region37: #{tpu_custom_call.1} parent=1 // pred_fallthru
      _
    // Predicated region
    $region38: #{tpu_custom_call.1} parent=1 // pred_check
      _
    $region39: #{tpu_custom_call.1} parent=1 // pred_check_branch
      %63 = sbr.rel (0) target = $region41
    $region40: #{tpu_custom_call.1} parent=1 // pred_region
      %64 = dma.done [#allocation4], 128
    $region41: #{tpu_custom_call.1} parent=1 // pred_fallthru
      _
    // Predicated region
    $region42: #{tpu_custom_call.1} parent=1 // pred_check
      _
    $region43: #{tpu_custom_call.1} parent=1 // pred_check_branch
      %66 = sbr.rel (0) target = $region45
    $region44: #{tpu_custom_call.1} parent=1 // pred_region
      %67 = dma.done [#allocation7], 256
    $region45: #{tpu_custom_call.1} parent=1 // pred_fallthru
      _
    // Predicated region
    $region46: #{tpu_custom_call.1} parent=1 // pred_check
      _
    $region47: #{tpu_custom_call.1} parent=1 // pred_check_branch
      %69 = sbr.rel (0) target = $region49
    $region48: #{tpu_custom_call.1} parent=1 // pred_region
      %70 = dma.done [#allocation7], 64
    $region49: #{tpu_custom_call.1} parent=1 // pred_fallthru
      _
    %v71 = vld [vmem:[#allocation3] sm:$0xff]
    %v72 = vld [vmem:[#allocation6] sm:$0xff]
    %v73 = vld [vmem:[#allocation6 + $0x8] sm:$0xff]
    %v74 = vld [vmem:[%s1] sm:$0xff]
    %v75 = vld [vmem:[#allocation8] sm:$0xf]
    %vm76 = vcmask 31744
    %v78 = vsel %vm76, %v74, 0
    %vm80 = vcmask 1043456
    %v82 = vsel %vm80, %v75, 0
    %84 = vmatprep.subr.mxu0 0.0
    %85 = vmatpush1.msra.mxu0 %v82
    %86 = vmatprep.subr.mxu0 0.0
    %87 = vmatpush1.msra.mxu0 0.0
    %88 = vmatprep.subr.mxu0 0.0
    %89 = vmatpush1.msra.mxu0 0.0
    %90 = vmatprep.subr.mxu0 0.0
    %91 = vmatpush1.msra.mxu0 0.0
    %92 = vmatprep.subr.mxu0 0.0
    %93 = vmatpush1.msra.mxu0 0.0
    %94 = vmatprep.subr.mxu0 0.0
    %95 = vmatpush1.msra.mxu0 0.0
    %96 = vmatprep.subr.mxu0 0.0
    %97 = vmatpush1.msra.mxu0 0.0
    %98 = vmatprep.subr.mxu0 0.0
    %99 = vmatpush1.msra.mxu0 0.0
    %100 = vmatprep.subr.mxu0 0.0
    %101 = vmatpush1.msra.mxu0 0.0
    %102 = vmatprep.subr.mxu0 0.0
    %103 = vmatpush1.msra.mxu0 0.0
    %104 = vmatprep.subr.mxu0 0.0
    %105 = vmatpush1.msra.mxu0 0.0
    %106 = vmatprep.subr.mxu0 0.0
    %107 = vmatpush1.msra.mxu0 0.0
    %108 = vmatprep.subr.mxu0 0.0
    %109 = vmatpush1.msra.mxu0 0.0
    %110 = vmatprep.subr.mxu0 0.0
    %111 = vmatpush1.msra.mxu0 0.0
    %112 = vmatprep.subr.mxu0 0.0
    %113 = vmatpush1.msra.mxu0 0.0
    %114 = vmatprep.subr.mxu0 0.0
    %115 = vmatpush1.msra.mxu0 0.0
    %116 = vmatprep.subr.mxu0 0.0
    %117 = vmatpush1.msra.mxu0 0.0
    %118 = vmatprep.subr.mxu0 0.0
    %119 = vmatpush1.msra.mxu0 0.0
    %120 = vmatprep.subr.mxu0 0.0
    %121 = vmatpush1.msra.mxu0 0.0
    %122 = vmatprep.subr.mxu0 0.0
    %123 = vmatpush1.msra.mxu0 0.0
    %124 = vmatprep.subr.mxu0 0.0
    %125 = vmatpush1.msra.mxu0 0.0
    %126 = vmatprep.subr.mxu0 0.0
    %127 = vmatpush1.msra.mxu0 0.0
    %128 = vmatprep.subr.mxu0 0.0
    %129 = vmatpush1.msra.mxu0 0.0
    %130 = vmatprep.subr.mxu0 0.0
    %131 = vmatpush1.msra.mxu0 0.0
    %132 = vmatprep.subr.mxu0 0.0
    %133 = vmatpush1.msra.mxu0 0.0
    %134 = vmatprep.subr.mxu0 0.0
    %135 = vmatpush1.msra.mxu0 0.0
    %136 = vmatprep.subr.mxu0 0.0
    %137 = vmatpush1.msra.mxu0 0.0
    %138 = vmatprep.subr.mxu0 0.0
    %139 = vmatpush1.msra.mxu0 0.0
    %140 = vmatprep.subr.mxu0 0.0
    %141 = vmatpush1.msra.mxu0 0.0
    %142 = vmatprep.subr.mxu0 0.0
    %143 = vmatpush1.msra.mxu0 0.0
    %144 = vmatprep.subr.mxu0 0.0
    %145 = vmatpush1.msra.mxu0 0.0
    %146 = vmatprep.subr.mxu0 0.0
    %147 = vmatpush1.msra.mxu0 0.0
    %148 = vmatprep.mubr.f32.mxu0 0.0
    %149 = vmatmul.mubr.f32.gmra.mrb[0].mxu0 %v78
    %v150 = vpop.f32.mrb[0].mxu0
    %v151 = vadd.f32 0.0, %v150
    %v152 = vpop.f32.mrb[0].mxu0
    %153 = vdwg.mxu0
    %vm154 = vcmask 130048
    %v156 = vsel %vm154, %v71, 0
    %158 = vmatprep.subr.mxu0 0.0
    %159 = vmatpush1.msra.mxu0 %v72
    %160 = vmatprep.subr.mxu0 0.0
    %161 = vmatpush1.msra.mxu0 %v73
    %162 = vmatprep.subr.mxu0 0.0
    %163 = vmatpush1.msra.mxu0 0.0
    %164 = vmatprep.subr.mxu0 0.0
    %165 = vmatpush1.msra.mxu0 0.0
    %166 = vmatprep.subr.mxu0 0.0
    %167 = vmatpush1.msra.mxu0 0.0
    %168 = vmatprep.subr.mxu0 0.0
    %169 = vmatpush1.msra.mxu0 0.0
    %170 = vmatprep.subr.mxu0 0.0
    %171 = vmatpush1.msra.mxu0 0.0
    %172 = vmatprep.subr.mxu0 0.0
    %173 = vmatpush1.msra.mxu0 0.0
    %174 = vmatprep.subr.mxu0 0.0
    %175 = vmatpush1.msra.mxu0 0.0
    %176 = vmatprep.subr.mxu0 0.0
    %177 = vmatpush1.msra.mxu0 0.0
    %178 = vmatprep.subr.mxu0 0.0
    %179 = vmatpush1.msra.mxu0 0.0
    %180 = vmatprep.subr.mxu0 0.0
    %181 = vmatpush1.msra.mxu0 0.0
    %182 = vmatprep.subr.mxu0 0.0
    %183 = vmatpush1.msra.mxu0 0.0
    %184 = vmatprep.subr.mxu0 0.0
    %185 = vmatpush1.msra.mxu0 0.0
    %186 = vmatprep.subr.mxu0 0.0
    %187 = vmatpush1.msra.mxu0 0.0
    %188 = vmatprep.subr.mxu0 0.0
    %189 = vmatpush1.msra.mxu0 0.0
    %190 = vmatprep.subr.mxu0 0.0
    %191 = vmatpush1.msra.mxu0 0.0
    %192 = vmatprep.subr.mxu0 0.0
    %193 = vmatpush1.msra.mxu0 0.0
    %194 = vmatprep.subr.mxu0 0.0
    %195 = vmatpush1.msra.mxu0 0.0
    %196 = vmatprep.subr.mxu0 0.0
    %197 = vmatpush1.msra.mxu0 0.0
    %198 = vmatprep.subr.mxu0 0.0
    %199 = vmatpush1.msra.mxu0 0.0
    %200 = vmatprep.subr.mxu0 0.0
    %201 = vmatpush1.msra.mxu0 0.0
    %202 = vmatprep.subr.mxu0 0.0
    %203 = vmatpush1.msra.mxu0 0.0
    %204 = vmatprep.subr.mxu0 0.0
    %205 = vmatpush1.msra.mxu0 0.0
    %206 = vmatprep.subr.mxu0 0.0
    %207 = vmatpush1.msra.mxu0 0.0
    %208 = vmatprep.subr.mxu0 0.0
    %209 = vmatpush1.msra.mxu0 0.0
    %210 = vmatprep.subr.mxu0 0.0
    %211 = vmatpush1.msra.mxu0 0.0
    %212 = vmatprep.subr.mxu0 0.0
    %213 = vmatpush1.msra.mxu0 0.0
    %214 = vmatprep.subr.mxu0 0.0
    %215 = vmatpush1.msra.mxu0 0.0
    %216 = vmatprep.subr.mxu0 0.0
    %217 = vmatpush1.msra.mxu0 0.0
    %218 = vmatprep.subr.mxu0 0.0
    %219 = vmatpush1.msra.mxu0 0.0
    %220 = vmatprep.subr.mxu0 0.0
    %221 = vmatpush1.msra.mxu0 0.0
    %222 = vmatprep.mubr.f32.mxu0 0.0
    %223 = vmatmul.mubr.f32.gmra.mrb[0].mxu0 %v156
    %v224 = vpop.f32.mrb[0].mxu0
    %v225 = vadd.f32 %v151, %v224
    %v226 = vpop.f32.mrb[0].mxu0
    %227 = vdwg.mxu0
    %v228 = vld [vmem:[%s4] sm:$0x1]
    %v230 = vlaneseq
    %v231 = vshrl.u32 %v230, 7
    %v232 = vsub.s32 0, %v231
    %v233 = vrot.slane %v228, %v232
    %v235 = vadd.f32 %v225, %v233
    %v236 = vmax.f32 %v235, 0.0
    %v237 = vld [vmem:[%s5] sm:$0xff]
    %v238 = vld [vmem:[%s5 + $0x8] sm:$0xff]
    %v239 = vld [vmem:[%s5 + $0x10] sm:$0xff]
    %v240 = vld [vmem:[%s5 + $0x18] sm:$0xff]
    %v241 = vld [vmem:[%s6] sm:$0x1]
    %v243 = vlaneseq
    %v244 = vshrl.u32 %v243, 7
    %v245 = vsub.s32 0, %v244
    %v246 = vrot.slane %v241, %v245
    %vm248 = vcmask 261120
    %v250 = vsel %vm248, %v236, 0
    %252 = vmatprep.subr.mxu0 0.0
    %253 = vmatpush1.msra.mxu0 %v237
    %254 = vmatprep.subr.mxu0 0.0
    %255 = vmatpush1.msra.mxu0 %v238
    %256 = vmatprep.subr.mxu0 0.0
    %257 = vmatpush1.msra.mxu0 %v239
    %258 = vmatprep.subr.mxu0 0.0
    %259 = vmatpush1.msra.mxu0 %v240
    %260 = vmatprep.subr.mxu0 0.0
    %261 = vmatpush1.msra.mxu0 0.0
    %262 = vmatprep.subr.mxu0 0.0
    %263 = vmatpush1.msra.mxu0 0.0
    %264 = vmatprep.subr.mxu0 0.0
    %265 = vmatpush1.msra.mxu0 0.0
    %266 = vmatprep.subr.mxu0 0.0
    %267 = vmatpush1.msra.mxu0 0.0
    %268 = vmatprep.subr.mxu0 0.0
    %269 = vmatpush1.msra.mxu0 0.0
    %270 = vmatprep.subr.mxu0 0.0
    %271 = vmatpush1.msra.mxu0 0.0
    %272 = vmatprep.subr.mxu0 0.0
    %273 = vmatpush1.msra.mxu0 0.0
    %274 = vmatprep.subr.mxu0 0.0
    %275 = vmatpush1.msra.mxu0 0.0
    %276 = vmatprep.subr.mxu0 0.0
    %277 = vmatpush1.msra.mxu0 0.0
    %278 = vmatprep.subr.mxu0 0.0
    %279 = vmatpush1.msra.mxu0 0.0
    %280 = vmatprep.subr.mxu0 0.0
    %281 = vmatpush1.msra.mxu0 0.0
    %282 = vmatprep.subr.mxu0 0.0
    %283 = vmatpush1.msra.mxu0 0.0
    %284 = vmatprep.subr.mxu0 0.0
    %285 = vmatpush1.msra.mxu0 0.0
    %286 = vmatprep.subr.mxu0 0.0
    %287 = vmatpush1.msra.mxu0 0.0
    %288 = vmatprep.subr.mxu0 0.0
    %289 = vmatpush1.msra.mxu0 0.0
    %290 = vmatprep.subr.mxu0 0.0
    %291 = vmatpush1.msra.mxu0 0.0
    %292 = vmatprep.subr.mxu0 0.0
    %293 = vmatpush1.msra.mxu0 0.0
    %294 = vmatprep.subr.mxu0 0.0
    %295 = vmatpush1.msra.mxu0 0.0
    %296 = vmatprep.subr.mxu0 0.0
    %297 = vmatpush1.msra.mxu0 0.0
    %298 = vmatprep.subr.mxu0 0.0
    %299 = vmatpush1.msra.mxu0 0.0
    %300 = vmatprep.subr.mxu0 0.0
    %301 = vmatpush1.msra.mxu0 0.0
    %302 = vmatprep.subr.mxu0 0.0
    %303 = vmatpush1.msra.mxu0 0.0
    %304 = vmatprep.subr.mxu0 0.0
    %305 = vmatpush1.msra.mxu0 0.0
    %306 = vmatprep.subr.mxu0 0.0
    %307 = vmatpush1.msra.mxu0 0.0
    %308 = vmatprep.subr.mxu0 0.0
    %309 = vmatpush1.msra.mxu0 0.0
    %310 = vmatprep.subr.mxu0 0.0
    %311 = vmatpush1.msra.mxu0 0.0
    %312 = vmatprep.subr.mxu0 0.0
    %313 = vmatpush1.msra.mxu0 0.0
    %314 = vmatprep.subr.mxu0 0.0
    %315 = vmatpush1.msra.mxu0 0.0
    %316 = vmatprep.mubr.f32.mxu0 0.0
    %317 = vmatmul.mubr.f32.gmra.mrb[0].mxu0 %v250
    %v318 = vpop.f32.mrb[0].mxu0
    %v319 = vadd.f32 %v246, %v318
    %v320 = vpop.f32.mrb[0].mxu0
    %321 = vdwg.mxu0
    %v322 = vmax.f32 %v319, 0.0
    %v323 = vld [vmem:[%s7] sm:$0x1]
    %v325 = vlaneseq
    %v326 = vshrl.u32 %v325, 7
    %v327 = vsub.s32 0, %v326
    %v328 = vrot.slane %v323, %v327
    %v330 = vmul.f32 %v322, %v328
    %v331 = vsel %vm248, %v330, 0.0
    %332 = vadd.xlane.f32.xlu0 %v331
    %v333 = vpop.xlane.xlu0 %332
    %s334 = sld [smem:[#allocation2]]
    %v335 = vstv %s334
    %v336 = vadd.f32 %v333, %v335
    %v338 = vlaneseq
    %v339 = vand.u32 %v338, 127
    %v340 = vlaneseq
    %v341 = vshrl.u32 %v340, 7
    %v342 = vsub.s32 %v339, %v341
    %v343 = vrot.slane %v336, %v342
    %vm345 = vcmask 57344
    %346 = vst.msk [vmem:[#allocation9] sm:$0x1] %vm345, %v343
    // Predicated region
    $region50: #{tpu_custom_call.1} parent=1 // pred_check
      _
    $region51: #{tpu_custom_call.1} parent=1 // pred_check_branch
      %348 = sbr.rel (0) target = $region53
    $region52: #{tpu_custom_call.1} parent=1 // pred_region
      %s350 = ssub.s32 16, 16
      %351 = vsyncadd [#allocation5], %s350
      %s353 = sshll.u32 [#allocation9], 4
      %s354 = int_to_ptr.vmem [resolvable:$true] %s353
      %356 = dma.vmem_to_hbm [thread:$0]  %s354, 16, %s9, [#allocation5]
    $region53: #{tpu_custom_call.1} parent=1 // pred_fallthru
      _
    // Predicated region
    $region54: #{tpu_custom_call.1} parent=1 // pred_check
      _
    $region55: #{tpu_custom_call.1} parent=1 // pred_check_branch
      %358 = sbr.rel (0) target = $region57
    $region56: #{tpu_custom_call.1} parent=1 // pred_region
      %359 = dma.done [#allocation5], 16
    $region57: #{tpu_custom_call.1} parent=1 // pred_fallthru
      _
    %360 = vsyncpa [#allocation4], 1
    %361 = vsyncpa [#allocation7], 1
    %362 = vsyncpa [#allocation5], 1

</llo_original>
